<compile_context>
chip_gen: v5e
topology: v5e:2x2
jax: 0.10.0
libtpu: 0.0.40
codegen_flags: <defaults>
</compile_context>

<pallas_src>
import math

import jax
import jax.numpy as jnp
import numpy as np
from jax.experimental import pallas as pl
from jax.experimental.pallas import tpu as pltpu

# ----------------------------- small config ---------------------------------
B, T = 2, 8
N_EMBD = 64
INTERMEDIATE = 128


# ------------------------------- kernel --------------------------------------
def _llama_mlp_kernel(x_ref, w12_ref, b12_ref, w3_ref, b3_ref, o_ref):
    i = w3_ref.shape[0]                          # intermediate size (static)
    x = x_ref[...].astype(jnp.bfloat16)          # no-op if producer gives bf16

    # Fused fc_1 || fc_2: one 256-wide MXU matmul + one fused bias add (fp32 accum).
    h_cat = jnp.dot(x, w12_ref[...], preferred_element_type=jnp.float32) + b12_ref[...]
    h1 = h_cat[:, :i]                            # 128-lane aligned static slices
    h2 = h_cat[:, i:]

    # SiLU gate in fp32 (EUP sigmoid), then proj matmul with fp32 accumulation.
    h = (h1 * jax.nn.sigmoid(h1)) * h2
    out = jnp.dot(h.astype(jnp.bfloat16), w3_ref[...],
                  preferred_element_type=jnp.float32) + b3_ref[...]
    o_ref[...] = out.astype(o_ref.dtype)


def llama_mlp(x, prep):
    # x: (B, T, C), preferably bf16; prep: fused / pre-transposed / pre-cast params.
    b, t, c = x.shape
    n = b * t
    x2d = x.reshape(n, c)

    vmem = pl.BlockSpec(memory_space=pltpu.MemorySpace.VMEM)   # full array, VMEM resident
    out2d = pl.pallas_call(
        _llama_mlp_kernel,
        out_shape=jax.ShapeDtypeStruct((n, c), x.dtype),
        in_specs=[vmem, vmem, vmem, vmem, vmem],
        out_specs=vmem,
    )(x2d, prep["w12"], prep["b12"], prep["w3"], prep["b3"])
    return out2d.reshape(b, t, c)


# ------------------------- one-time parameter prep ----------------------------
def prepare_params(params):
    # torch nn.Linear stores W as (out, in); transpose ONCE to (in, out),
    # concatenate fc_1 || fc_2 along the output axis, and down-cast weights to
    # bf16 for the MXU.  Biases stay fp32, shaped (1, out) for lane-broadcast
    # adds inside the kernel.
    w12 = jnp.concatenate([params["fc1_w"].T, params["fc2_w"].T], axis=1)
    b12 = jnp.concatenate([params["fc1_b"], params["fc2_b"]])
    return dict(
        w12=w12.astype(jnp.bfloat16),            # (C, 2*I)
        b12=b12.reshape(1, -1),                  # (1, 2*I) fp32
        w3=params["proj_w"].T.astype(jnp.bfloat16),   # (I, C)
        b3=params["proj_b"].reshape(1, -1),      # (1, C) fp32
    )


# --------------------------- pure-JAX reference -------------------------------
def llama_mlp_ref(params, x):
    h1 = x @ params["fc1_w"].T + params["fc1_b"]
    h2 = x @ params["fc2_w"].T + params["fc2_b"]
    return (jax.nn.silu(h1) * h2) @ params["proj_w"].T + params["proj_b"]


# --------------------------------- init ---------------------------------------
def init_params(key):
    ks = jax.random.split(key, 6)

    def lin_init(kw, kb, out_f, in_f):
        w = jax.random.normal(kw, (out_f, in_f), jnp.float32) * 0.02
        bnd = 1.0 / math.sqrt(in_f)
        bias = jax.random.uniform(kb, (out_f,), jnp.float32, -bnd, bnd)
        return w, bias

    fc1_w, fc1_b = lin_init(ks[0], ks[1], INTERMEDIATE, N_EMBD)
    fc2_w, fc2_b = lin_init(ks[2], ks[3], INTERMEDIATE, N_EMBD)
    proj_w, proj_b = lin_init(ks[4], ks[5], N_EMBD, INTERMEDIATE)
    return dict(fc1_w=fc1_w, fc1_b=fc1_b,
                fc2_w=fc2_w, fc2_b=fc2_b,
                proj_w=proj_w, proj_b=proj_b)


if __name__ == "__main__":
    key = jax.random.PRNGKey(0)
    kx, kp = jax.random.split(key)
    x_f32 = jax.random.normal(kx, (B, T, N_EMBD), jnp.float32)
    params = init_params(kp)

    prep = prepare_params(params)             # layout/fusion conversion happens once
    x = x_f32.astype(jnp.bfloat16)            # bf16 input contract (producer side)

    out = jax.jit(llama_mlp)(x, prep)
    out = jax.block_until_ready(out)

    ref = llama_mlp_ref(params, x_f32)        # fp32 reference
    assert out.shape == (B, T, N_EMBD)
    np.testing.assert_allclose(np.asarray(out.astype(jnp.float32)),
                               np.asarray(ref), rtol=2e-2, atol=2e-2)
    print("KERNEL_OK")
</pallas_src>

<mosaic_0001>
module attributes {stable_mosaic.version = 11 : i64} {
  func.func @_llama_mlp_kernel(%arg0: memref<16x64xbf16, #tpu.memory_space<vmem>>, %arg1: memref<64x256xbf16, #tpu.memory_space<vmem>>, %arg2: memref<1x256xf32, #tpu.memory_space<vmem>>, %arg3: memref<128x64xbf16, #tpu.memory_space<vmem>>, %arg4: memref<1x64xf32, #tpu.memory_space<vmem>>, %arg5: memref<16x64xbf16, #tpu.memory_space<vmem>>) attributes {dimension_semantics = [], scalar_prefetch = 0 : i64, scratch_operands = 0 : i64, tpu.core_type = #tpu.core_type<tc>} {
    %c0 = arith.constant 0 : index
    %c0_0 = arith.constant 0 : index
    %0 = vector.load %arg0[%c0, %c0_0] : memref<16x64xbf16, #tpu.memory_space<vmem>>, vector<16x64xbf16>
    %c0_1 = arith.constant 0 : index
    %c0_2 = arith.constant 0 : index
    %1 = vector.load %arg1[%c0_1, %c0_2] : memref<64x256xbf16, #tpu.memory_space<vmem>>, vector<64x256xbf16>
    %cst = arith.constant dense<0.000000e+00> : vector<16x256xf32>
    %2 = tpu.matmul %0, %1, %cst {dimension_numbers = #tpu.dot_dimension_numbers<[1], [0], [0], [1], [0, 0, 1, 1], [], []>} : vector<16x64xbf16>, vector<64x256xbf16>, vector<16x256xf32> -> vector<16x256xf32>
    %c0_3 = arith.constant 0 : index
    %c0_4 = arith.constant 0 : index
    %3 = vector.load %arg2[%c0_3, %c0_4] : memref<1x256xf32, #tpu.memory_space<vmem>>, vector<1x256xf32>
    %4 = vector.broadcast %3 : vector<1x256xf32> to vector<16x256xf32>
    %5 = arith.addf %2, %4 : vector<16x256xf32>
    %6 = vector.extract_strided_slice %5 {offsets = [0, 0], sizes = [16, 128], strides = [1, 1]} : vector<16x256xf32> to vector<16x128xf32>
    %7 = vector.extract_strided_slice %5 {offsets = [0, 128], sizes = [16, 128], strides = [1, 1]} : vector<16x256xf32> to vector<16x128xf32>
    %8 = arith.negf %6 : vector<16x128xf32>
    %9 = math.exp %8 : vector<16x128xf32>
    %cst_5 = arith.constant 1.000000e+00 : f32
    %10 = vector.broadcast %cst_5 : f32 to vector<16x128xf32>
    %11 = arith.addf %10, %9 : vector<16x128xf32>
    %12 = arith.divf %10, %11 : vector<16x128xf32>
    %13 = arith.mulf %6, %12 : vector<16x128xf32>
    %14 = arith.mulf %13, %7 : vector<16x128xf32>
    %15 = arith.truncf %14 : vector<16x128xf32> to vector<16x128xbf16>
    %c0_6 = arith.constant 0 : index
    %c0_7 = arith.constant 0 : index
    %16 = vector.load %arg3[%c0_6, %c0_7] : memref<128x64xbf16, #tpu.memory_space<vmem>>, vector<128x64xbf16>
    %cst_8 = arith.constant dense<0.000000e+00> : vector<16x64xf32>
    %17 = tpu.matmul %15, %16, %cst_8 {dimension_numbers = #tpu.dot_dimension_numbers<[1], [0], [0], [1], [0, 0, 1, 1], [], []>} : vector<16x128xbf16>, vector<128x64xbf16>, vector<16x64xf32> -> vector<16x64xf32>
    %c0_9 = arith.constant 0 : index
    %c0_10 = arith.constant 0 : index
    %18 = vector.load %arg4[%c0_9, %c0_10] : memref<1x64xf32, #tpu.memory_space<vmem>>, vector<1x64xf32>
    %19 = vector.broadcast %18 : vector<1x64xf32> to vector<16x64xf32>
    %20 = arith.addf %17, %19 : vector<16x64xf32>
    %21 = arith.truncf %20 : vector<16x64xf32> to vector<16x64xbf16>
    %c0_11 = arith.constant 0 : index
    %c0_12 = arith.constant 0 : index
    %22 = vector.load %arg5[%c0_11, %c0_12] : memref<16x64xbf16, #tpu.memory_space<vmem>>, vector<16x64xbf16>
    tpu.vector_store %arg5[%c0_11, %c0_12], %21 {strides = array<i32>} : memref<16x64xbf16, #tpu.memory_space<vmem>>, vector<16x64xbf16>,
    return
  }
}

</mosaic_0001>

<llo_original>
// kernel: llama_mlp.1
$region0: #{llama_mlp.1}
  #allocation0 [shape = 'u32[]', space=smem, size = 0x4, offset = 0x4, fixed_abs, tag = 'smem constant byte address 0x4 - core index']
  #allocation1 [shape = 'u32[72,128]{1,0:T(1,128)}', space=vmem, size = 0x9000, scoped, tag = 'internal scratch']
  %s0 = inlined_call_operand.vmem [shape: bf16[16,64], index: 0, kind: input, shape index: {}]
  %s1 = inlined_call_operand.vmem [shape: bf16[64,256], index: 1, kind: input, shape index: {}]
  %s2 = inlined_call_operand.vmem [shape: f32[1,256], index: 2, kind: input, shape index: {}]
  %s3 = inlined_call_operand.vmem [shape: bf16[128,64], index: 3, kind: input, shape index: {}]
  %s4 = inlined_call_operand.vmem [shape: f32[1,64], index: 4, kind: input, shape index: {}]
  %s5 = inlined_call_operand.hbm [shape: bf16[16,64], index: 5, kind: output, shape index: {}]
  %s6 = sld [smem:[#allocation0]]
  $region30: #{llama_mlp.1} parent=0
    _
  %s8 = ssub.s32 1, %s6
  %s9 = scalar_select 0, %s8, %s6
  $region1: #{llama_mlp.1} parent=0
    #allocation2 [shape = 'u8[4096]{0}', space=vmem, size = 0x1000, scoped, tag = 'output window, operand 0, single buffered']
    #allocation3 [shape = 's32[1]{0}', space=sflag, size = 0x4, scoped, tag = 'scoped memory for llama_mlp.1']
    %10 = vsyncpa [#allocation3], 0
    // Predicated region
    $region2: #{llama_mlp.1} parent=1 // pred_check
      _
    $region3: #{llama_mlp.1} parent=1 // pred_check_branch
      %12 = sbr.rel (0) target = $region5
    $region4: #{llama_mlp.1} parent=1 // pred_region
      _
    $region5: #{llama_mlp.1} parent=1 // pred_fallthru
      _
    // Predicated region
    $region6: #{llama_mlp.1} parent=1 // pred_check
      _
    $region7: #{llama_mlp.1} parent=1 // pred_check_branch
      %14 = sbr.rel (0) target = $region9
    $region8: #{llama_mlp.1} parent=1 // pred_region
      _
    $region9: #{llama_mlp.1} parent=1 // pred_fallthru
      _
    // Predicated region
    $region10: #{llama_mlp.1} parent=1 // pred_check
      _
    $region11: #{llama_mlp.1} parent=1 // pred_check_branch
      %16 = sbr.rel (0) target = $region13
    $region12: #{llama_mlp.1} parent=1 // pred_region
      _
    $region13: #{llama_mlp.1} parent=1 // pred_fallthru
      _
    // Predicated region
    $region14: #{llama_mlp.1} parent=1 // pred_check
      _
    $region15: #{llama_mlp.1} parent=1 // pred_check_branch
      %18 = sbr.rel (0) target = $region17
    $region16: #{llama_mlp.1} parent=1 // pred_region
      _
    $region17: #{llama_mlp.1} parent=1 // pred_fallthru
      _
    // Predicated region
    $region18: #{llama_mlp.1} parent=1 // pred_check
      _
    $region19: #{llama_mlp.1} parent=1 // pred_check_branch
      %20 = sbr.rel (0) target = $region21
    $region20: #{llama_mlp.1} parent=1 // pred_region
      _
    $region21: #{llama_mlp.1} parent=1 // pred_fallthru
      _
    %v22 = vld [vmem:[%s0] sm:$0xf]
    %v23 = vld [vmem:[%s0 + $0x4] sm:$0xf]
    %v24 = vld [vmem:[%s1] sm:$0xff]
    %v25 = vld [vmem:[%s1 + $0x8] sm:$0xff]
    %v26 = vld [vmem:[%s1 + $0x10] sm:$0xff]
    %v27 = vld [vmem:[%s1 + $0x18] sm:$0xff]
    %v28 = vld [vmem:[%s1 + $0x20] sm:$0xff]
    %v29 = vld [vmem:[%s1 + $0x28] sm:$0xff]
    %v30 = vld [vmem:[%s1 + $0x30] sm:$0xff]
    %v31 = vld [vmem:[%s1 + $0x38] sm:$0xff]
    %v32 = vld [vmem:[%s2] sm:$0x3]
    %v34 = vperm.slane %v32, 0
    %v35 = vperm.slane %v32, 1
    %v40 = vunpack.c.l.b16 %v22
    %v41 = vunpack.c.l.b16 %v23
    %v42 = vpack.c.b16 %v41, %v40
    %v51 = vunpack.c.l.b16 %v24
    %v52 = vunpack.c.h.b16 %v24
    %v53 = vunpack.c.l.b16 %v25
    %v54 = vunpack.c.h.b16 %v25
    %v55 = vunpack.c.l.b16 %v26
    %v56 = vunpack.c.h.b16 %v26
    %v57 = vunpack.c.l.b16 %v27
    %v58 = vunpack.c.h.b16 %v27
    %v59 = vunpack.c.l.b16 %v28
    %v60 = vunpack.c.h.b16 %v28
    %v61 = vunpack.c.l.b16 %v29
    %v62 = vunpack.c.h.b16 %v29
    %v63 = vunpack.c.l.b16 %v30
    %v64 = vunpack.c.h.b16 %v30
    %v65 = vunpack.c.l.b16 %v31
    %v66 = vunpack.c.h.b16 %v31
    %v67 = vpack.c.b16 %v53, %v51
    %v68 = vpack.c.b16 %v54, %v52
    %v69 = vpack.c.b16 %v57, %v55
    %v70 = vpack.c.b16 %v58, %v56
    %v71 = vpack.c.b16 %v61, %v59
    %v72 = vpack.c.b16 %v62, %v60
    %v73 = vpack.c.b16 %v65, %v63
    %v74 = vpack.c.b16 %v66, %v64
    %vm83 = vcmask 523264
    %v85 = vsel %vm83, %v42, 0
    %87 = vmatpush.bf16.msra.mxu0 0
    %88 = vmatpush.bf16.msra.mxu0 0
    %89 = vmatpush.bf16.msra.mxu0 0
    %90 = vmatpush.bf16.msra.mxu0 0
    %91 = vmatpush.bf16.msra.mxu0 %v73
    %92 = vmatpush.bf16.msra.mxu0 %v71
    %93 = vmatpush.bf16.msra.mxu0 %v69
    %94 = vmatpush.bf16.msra.mxu0 %v67
    %95 = vmatmul.bf16.gmra.mxu0 %v85
    %v96 = vpop.f32.mrf.mxu0
    %v97 = vadd.f32 %v34, %v96
    %v98 = vpop.f32.mrf.mxu0
    %v99 = vadd.f32 %v34, %v98
    %100 = vdwg.mxu0
    %101 = vmatpush.bf16.msra.mxu0 0
    %102 = vmatpush.bf16.msra.mxu0 0
    %103 = vmatpush.bf16.msra.mxu0 0
    %104 = vmatpush.bf16.msra.mxu0 0
    %105 = vmatpush.bf16.msra.mxu0 %v74
    %106 = vmatpush.bf16.msra.mxu0 %v72
    %107 = vmatpush.bf16.msra.mxu0 %v70
    %108 = vmatpush.bf16.msra.mxu0 %v68
    %109 = vmatmul.bf16.gmra.mxu0 %v85
    %v110 = vpop.f32.mrf.mxu0
    %v111 = vadd.f32 %v35, %v110
    %v112 = vpop.f32.mrf.mxu0
    %v113 = vadd.f32 %v35, %v112
    %114 = vdwg.mxu0
    %v115 = vxor.u32 %v97, 2147483648
    %v116 = vxor.u32 %v99, 2147483648
    %v117 = vmul.f32 %v115, 1.442695
    %v118 = vpow.pop %v117
    %v119 = vmul.f32 %v116, 1.442695
    %v120 = vpow.pop %v119
    %v121 = vadd.f32 %v118, 1.0
    %v122 = vadd.f32 %v120, 1.0
    %v123 = vrcp.pop %v121
    %v124 = vmul.f32 %v121, %v123
    %v125 = vsub.f32 1.0, %v124
    %v126 = vmul.f32 %v123, %v125
    %v127 = vadd.f32 %v123, %v126
    %vm128 = vweird.f32 %v121
    %vm129 = vweird.f32 %v123
    %vm130 = vmor %vm128, %vm129
    %v131 = vsel %vm130, %v123, %v127
    %v132 = vand.u32 2147483647, %v121
    %vm133 = vcmp.eq.f32.partialorder %v132, 8.507059e+37
    %v134 = vand.u32 %v121, 2147483648
    %v135 = vor.u32 1.1754944e-38, %v134
    %v136 = vsel %vm133, %v135, %v131
    %v137 = vmul.f32 1.0, %v136
    %v138 = vrcp.pop %v122
    %v139 = vmul.f32 %v122, %v138
    %v140 = vsub.f32 1.0, %v139
    %v141 = vmul.f32 %v138, %v140
    %v142 = vadd.f32 %v138, %v141
    %vm143 = vweird.f32 %v122
    %vm144 = vweird.f32 %v138
    %vm145 = vmor %vm143, %vm144
    %v146 = vsel %vm145, %v138, %v142
    %v147 = vand.u32 2147483647, %v122
    %vm148 = vcmp.eq.f32.partialorder %v147, 8.507059e+37
    %v149 = vand.u32 %v122, 2147483648
    %v150 = vor.u32 1.1754944e-38, %v149
    %v151 = vsel %vm148, %v150, %v146
    %v152 = vmul.f32 1.0, %v151
    %v153 = vmul.f32 %v97, %v137
    %v154 = vmul.f32 %v99, %v152
    %v155 = vmul.f32 %v153, %v111
    %v156 = vmul.f32 %v154, %v113
    %v157 = vpack.c.bf16 %v156, %v155
    %v158 = vld [vmem:[%s3] sm:$0xf]
    %v159 = vld [vmem:[%s3 + $0x4] sm:$0xf]
    %v160 = vld [vmem:[%s3 + $0x8] sm:$0xf]
    %v161 = vld [vmem:[%s3 + $0xc] sm:$0xf]
    %v162 = vld [vmem:[%s3 + $0x10] sm:$0xf]
    %v163 = vld [vmem:[%s3 + $0x14] sm:$0xf]
    %v164 = vld [vmem:[%s3 + $0x18] sm:$0xf]
    %v165 = vld [vmem:[%s3 + $0x1c] sm:$0xf]
    %v166 = vld [vmem:[%s3 + $0x20] sm:$0xf]
    %v167 = vld [vmem:[%s3 + $0x24] sm:$0xf]
    %v168 = vld [vmem:[%s3 + $0x28] sm:$0xf]
    %v169 = vld [vmem:[%s3 + $0x2c] sm:$0xf]
    %v170 = vld [vmem:[%s3 + $0x30] sm:$0xf]
    %v171 = vld [vmem:[%s3 + $0x34] sm:$0xf]
    %v172 = vld [vmem:[%s3 + $0x38] sm:$0xf]
    %v173 = vld [vmem:[%s3 + $0x3c] sm:$0xf]
    %v174 = vld [vmem:[%s4] sm:$0x1]
    %v176 = vperm.slane %v174, 0
    %v194 = vunpack.c.l.b16 %v158
    %v195 = vunpack.c.l.b16 %v159
    %v196 = vunpack.c.l.b16 %v160
    %v197 = vunpack.c.l.b16 %v161
    %v198 = vunpack.c.l.b16 %v162
    %v199 = vunpack.c.l.b16 %v163
    %v200 = vunpack.c.l.b16 %v164
    %v201 = vunpack.c.l.b16 %v165
    %v202 = vunpack.c.l.b16 %v166
    %v203 = vunpack.c.l.b16 %v167
    %v204 = vunpack.c.l.b16 %v168
    %v205 = vunpack.c.l.b16 %v169
    %v206 = vunpack.c.l.b16 %v170
    %v207 = vunpack.c.l.b16 %v171
    %v208 = vunpack.c.l.b16 %v172
    %v209 = vunpack.c.l.b16 %v173
    %v210 = vpack.c.b16 %v195, %v194
    %v211 = vpack.c.b16 %v197, %v196
    %v212 = vpack.c.b16 %v199, %v198
    %v213 = vpack.c.b16 %v201, %v200
    %v214 = vpack.c.b16 %v203, %v202
    %v215 = vpack.c.b16 %v205, %v204
    %v216 = vpack.c.b16 %v207, %v206
    %v217 = vpack.c.b16 %v209, %v208
    %226 = vmatpush.bf16.msra.mxu0 %v217
    %227 = vmatpush.bf16.msra.mxu0 %v216
    %228 = vmatpush.bf16.msra.mxu0 %v215
    %229 = vmatpush.bf16.msra.mxu0 %v214
    %230 = vmatpush.bf16.msra.mxu0 %v213
    %231 = vmatpush.bf16.msra.mxu0 %v212
    %232 = vmatpush.bf16.msra.mxu0 %v211
    %233 = vmatpush.bf16.msra.mxu0 %v210
    %234 = vmatmul.bf16.gmra.mxu0 %v157
    %v235 = vpop.f32.mrf.mxu0
    %v236 = vadd.f32 %v176, %v235
    %v237 = vpop.f32.mrf.mxu0
    %v238 = vadd.f32 %v176, %v237
    %239 = vdwg.mxu0
    %v240 = vpack.c.bf16 %v236, %v236
    %v241 = vpack.c.bf16 %v238, %v238
    %vm242 = vcmask 519168
    %243 = vst.msk [vmem:[#allocation2] sm:$0xf] %vm242, %v240
    %244 = vst.msk [vmem:[#allocation2 + $0x4] sm:$0xf] %vm242, %v241
    // Predicated region
    $region22: #{llama_mlp.1} parent=1 // pred_check
      _
    $region23: #{llama_mlp.1} parent=1 // pred_check_branch
      %246 = sbr.rel (0) target = $region25
    $region24: #{llama_mlp.1} parent=1 // pred_region
      %248 = vsyncadd [#allocation3], 0
      %s249 = sshll.u32 [#allocation2], 4
      %s250 = int_to_ptr.vmem [resolvable:$true] %s249
      %s251 = sshll.u32 %s5, 4
      %s252 = int_to_ptr.hbm [resolvable:$true] %s251
      %257 = dma.vmem_to_hbm [thread:$0]  %s250, 128, %s252, [#allocation3], 64, 64, 4
    $region25: #{llama_mlp.1} parent=1 // pred_fallthru
      _
    // Predicated region
    $region26: #{llama_mlp.1} parent=1 // pred_check
      _
    $region27: #{llama_mlp.1} parent=1 // pred_check_branch
      %259 = sbr.rel (0) target = $region29
    $region28: #{llama_mlp.1} parent=1 // pred_region
      %261 = dma.done [#allocation3], 128
    $region29: #{llama_mlp.1} parent=1 // pred_fallthru
      _
    %262 = vsyncpa [#allocation3], 1

</llo_original>
